<compile_context>
chip_gen: v7x
topology: tpu7x:2x2x1
jax: 0.10.0
libtpu: 0.0.40
codegen_flags: <defaults>
</compile_context>

<pallas_src>
import functools

import jax
import jax.numpy as jnp
from jax import lax
from jax.experimental import pallas as pl
from jax.experimental.pallas import tpu as pltpu


MAX_PIX_TILE = 131072            # cap on pixels per spatial tile (review: raised)


def _round_up(x, m):
    return (x + m - 1) // m * m


def _vmem_capacity_bytes():
    """Generation-keyed VMEM capacity (128 MiB v5e/v6e, 64 MiB per-TC v7x)."""
    try:
        info = pltpu.get_tpu_info()
        return int(getattr(info, "vmem_capacity_bytes", 128 * 1024 * 1024))
    except Exception:
        return 128 * 1024 * 1024


def _padded_rows(rows, dtype):
    """Rows occupied in VMEM for the flat (rows, T) layout (sublane padding)."""
    granule = 8 * max(1, 4 // jnp.dtype(dtype).itemsize)   # f32:8, bf16:16, i8:32
    return _round_up(rows, granule)


def _dice_kernel(pred_ref, tgt_ref, out_ref, acc_ref, *, n_classes, from_labels,
                 mask_tail, tile_len, valid_len):
    """One grid step: channel softmax, accumulate per-class [inter, sum_p, sum_t].

    pred_ref: (C, St, 128) or (C, T) logits tile
    tgt_ref : dense target (C, ...) or integer labels (1, ...)
    out_ref : (C, 3) per-batch partials    acc_ref: (C, 3) f32 VMEM accumulator
    """
    h = pl.program_id(1)

    @pl.when(h == 0)
    def _():
        acc_ref[...] = jnp.zeros_like(acc_ref)

    logits = pred_ref[...].astype(jnp.float32)

    if n_classes == 1:
        # Single-class branch of the PyTorch module uses sigmoid, not softmax.
        p = jax.nn.sigmoid(logits)
    else:
        m = jnp.max(logits, axis=0, keepdims=True)          # softmax over channels
        e = jnp.exp(logits - m)
        p = e * pl.reciprocal(jnp.sum(e, axis=0, keepdims=True), approx=True)

    if from_labels:
        lab = tgt_ref[...].astype(jnp.int32)                # (1, ...) any int dtype
        chan = lax.broadcasted_iota(jnp.int32, logits.shape, 0)
        onehot = lab == chan                                 # bool (C, ...)
        pt = jnp.where(onehot, p, 0.0)                       # p * one-hot, no f32 mat.
        t = onehot.astype(jnp.float32)
    else:
        t = tgt_ref[...].astype(jnp.float32)
        pt = p * t

    if mask_tail:
        # Final tile may be partial (no HBM-side padding): mask p AND target so
        # the unspecified tail contributes nothing to any of the three sums.
        idx = lax.broadcasted_iota(jnp.int32, logits.shape, 1)
        valid = (h * tile_len + idx) < valid_len
        p = jnp.where(valid, p, 0.0)
        t = jnp.where(valid, t, 0.0)
        pt = jnp.where(valid, pt, 0.0)

    def _rsum(x):                                            # -> (C, 1)
        while x.ndim > 2:
            x = jnp.sum(x, axis=1)
        return jnp.sum(x, axis=1, keepdims=True)

    upd = jnp.concatenate([_rsum(pt), _rsum(p), _rsum(t)], axis=1)   # (C, 3)
    acc_ref[...] += upd                                      # single fused update

    @pl.when(h == pl.num_programs(1) - 1)
    def _():
        out_ref[...] = acc_ref[...]


def _dice_stats(pred3, tgt3, *, from_labels, max_pix_tile=MAX_PIX_TILE):
    """Returns (C, 3) stats [intersection, sum_pred, sum_true] per class."""
    B, C, HW = pred3.shape
    tgt_rows = tgt3.shape[1]                     # C for dense target, 1 for labels
    pred_isz = jnp.dtype(pred3.dtype).itemsize
    tgt_isz = jnp.dtype(tgt3.dtype).itemsize

    dense = (HW % 128 == 0)

    vmem_cap = _vmem_capacity_bytes()
    input_budget = min(vmem_cap // 4, 32 * 1024 * 1024)   # double-buffered inputs
    vmem_limit = min(vmem_cap // 2, 96 * 1024 * 1024)     # scoped VMEM limit

    if dense:
        bytes_per_pix = C * pred_isz + tgt_rows * tgt_isz
    else:
        bytes_per_pix = (_padded_rows(C, pred3.dtype) * pred_isz
                         + _padded_rows(tgt_rows, tgt3.dtype) * tgt_isz)
    tpix = input_budget // (2 * bytes_per_pix)
    tpix = max(128, min(max_pix_tile, tpix) // 128 * 128)

    if dense:
        S = HW // 128
        st = tpix // 128
        if st >= S or S <= 8:
            st, n_sp, mask_tail = S, 1, False
        else:
            st = max(8, st // 8 * 8)             # (8,128)-aligned block rows
            n_sp = pl.cdiv(S, st)
            mask_tail = (S % st) != 0
        pred_in = pred3.reshape(B, C, S, 128)    # free minor-dim split, no copy
        tgt_in = tgt3.reshape(B, tgt_rows, S, 128)
        in_idx = lambda b, h: (b, 0, h, 0)
        in_specs = [pl.BlockSpec((None, C, st, 128), in_idx),
                    pl.BlockSpec((None, tgt_rows, st, 128), in_idx)]
        tile_len, valid_len = st, S
    else:
        if tpix >= HW:
            T, n_sp, mask_tail = HW, 1, False
        else:
            T = tpix
            n_sp = pl.cdiv(HW, T)
            mask_tail = (HW % T) != 0
        pred_in, tgt_in = pred3, tgt3
        in_idx = lambda b, h: (b, 0, h)
        in_specs = [pl.BlockSpec((None, C, T), in_idx),
                    pl.BlockSpec((None, tgt_rows, T), in_idx)]
        tile_len, valid_len = T, HW

    kernel = functools.partial(
        _dice_kernel, n_classes=C, from_labels=from_labels,
        mask_tail=mask_tail, tile_len=tile_len, valid_len=valid_len)

    bytes_accessed = int(pred_in.size * pred_isz + tgt_in.size * tgt_isz
                         + B * C * 3 * 4)
    cost = pl.CostEstimate(flops=int(10 * B * C * HW),
                           transcendentals=int(B * C * HW),
                           bytes_accessed=bytes_accessed)

    partials = pl.pallas_call(
        kernel,
        out_shape=jax.ShapeDtypeStruct((B, C, 3), jnp.float32),
        grid_spec=pltpu.PrefetchScalarGridSpec(
            num_scalar_prefetch=0,
            grid=(B, n_sp),                       # batch parallel, spatial reduce
            in_specs=in_specs,
            out_specs=pl.BlockSpec((None, C, 3), lambda b, h: (b, 0, 0)),
            scratch_shapes=[pltpu.VMEM((C, 3), jnp.float32)],
        ),
        compiler_params=pltpu.CompilerParams(
            dimension_semantics=("parallel", "arbitrary"),
            vmem_limit_bytes=vmem_limit,
        ),
        cost_estimate=cost,
    )(pred_in, tgt_in)

    return jnp.sum(partials, axis=0)             # (C, 3), summed over batch


def _finalize(stats, weight, smooth, n_classes):
    inter, sum_p, sum_t = stats[:, 0], stats[:, 1], stats[:, 2]
    if n_classes == 1:
        dice = (2.0 * inter[0] + smooth) / (sum_p[0] + sum_t[0] + smooth)
        return 1.0 - dice
    numerator = 2.0 * weight * inter + smooth
    denominator = sum_p + sum_t + smooth
    return 1.0 - jnp.sum(numerator / denominator)


def dice_loss(y_pred, y_true, weight=None, smooth=1.0, *, _max_pix_tile=MAX_PIX_TILE):
    """DiceLoss forward, NCHW inputs, dense target (matches the PyTorch module).

    y_true may be bf16 / int8 one-hot to halve / quarter target HBM traffic.
    """
    assert y_pred.shape == y_true.shape
    B, C, H, W = y_pred.shape
    weight = (jnp.ones((C,), jnp.float32) if weight is None
              else jnp.asarray(weight, jnp.float32))
    stats = _dice_stats(y_pred.reshape(B, C, H * W),
                        y_true.reshape(B, C, H * W),
                        from_labels=False, max_pix_tile=_max_pix_tile)
    return _finalize(stats, weight, smooth, C)


def dice_loss_from_labels(y_pred, labels, weight=None, smooth=1.0, *,
                          _max_pix_tile=MAX_PIX_TILE):
    """Fast path: integer class labels (B, H, W); one-hot built in-kernel.

    Any integer dtype (int8/uint8/int32) is accepted and widened in-kernel.
    """
    B, C, H, W = y_pred.shape
    assert labels.shape == (B, H, W) and C > 1
    if not jnp.issubdtype(labels.dtype, jnp.integer):
        labels = labels.astype(jnp.int32)
    weight = (jnp.ones((C,), jnp.float32) if weight is None
              else jnp.asarray(weight, jnp.float32))
    stats = _dice_stats(y_pred.reshape(B, C, H * W),
                        labels.reshape(B, 1, H * W),
                        from_labels=True, max_pix_tile=_max_pix_tile)
    return _finalize(stats, weight, smooth, C)


def _dice_loss_ref(y_pred, y_true, weight=None, smooth=1.0):
    # Pure-JAX reference mirroring the PyTorch module (multi-class path).
    B, C, H, W = y_pred.shape
    if weight is None:
        weight = jnp.ones((C,), jnp.float32)
    p = jax.nn.softmax(y_pred.astype(jnp.float32), axis=1)
    t = y_true.astype(jnp.float32)
    dice = 0.0
    for c in range(C):
        pc = p[:, c].reshape(-1)
        tc = t[:, c].reshape(-1)
        num = 2.0 * weight[c] * jnp.dot(pc, tc) + smooth
        den = jnp.sum(pc) + jnp.sum(tc) + smooth
        dice += num / den
    return 1.0 - dice


# TODO(synk): the `no_class` masked_select path and NaN/zero debug prints of the
# original per_class_dice_score are not translated (defaults never exercise them).

if __name__ == "__main__":
    key = jax.random.PRNGKey(0)
    k1, k2, k3, k4 = jax.random.split(key, 4)

    # 1) Main config — dense (C, S, 128) layout path (HW % 128 == 0).
    B, C, H, W = 2, 4, 16, 16
    y_pred = jax.random.normal(k1, (B, C, H, W), dtype=jnp.float32)
    labels = jax.random.randint(k2, (B, H, W), 0, C)
    y_true = jax.nn.one_hot(labels, C, dtype=jnp.float32).transpose(0, 3, 1, 2)

    ref = _dice_loss_ref(y_pred, y_true)
    out_dense = jax.block_until_ready(dice_loss(y_pred, y_true))
    out_labels = jax.block_until_ready(dice_loss_from_labels(y_pred, labels))
    # approx reciprocal => relax tolerance to 1e-3
    assert jnp.allclose(out_dense, ref, rtol=1e-3, atol=1e-3), (out_dense, ref)
    assert jnp.allclose(out_labels, ref, rtol=1e-3, atol=1e-3), (out_labels, ref)

    # 2) Flat fallback layout (HW % 128 != 0) with a forced small tile so the
    #    ragged lane-tail masking path (no jnp.pad) is exercised.
    H2 = W2 = 15
    y_pred2 = jax.random.normal(k3, (B, C, H2, W2), dtype=jnp.float32)
    labels2 = jax.random.randint(k4, (B, H2, W2), 0, C)
    y_true2 = jax.nn.one_hot(labels2, C, dtype=jnp.float32).transpose(0, 3, 1, 2)
    ref2 = _dice_loss_ref(y_pred2, y_true2)
    out2 = jax.block_until_ready(dice_loss(y_pred2, y_true2, _max_pix_tile=128))
    out2l = jax.block_until_ready(
        dice_loss_from_labels(y_pred2, labels2, _max_pix_tile=128))
    assert jnp.allclose(out2, ref2, rtol=1e-3, atol=1e-3), (out2, ref2)
    assert jnp.allclose(out2l, ref2, rtol=1e-3, atol=1e-3), (out2l, ref2)

    # 3) Dense layout with a partial (ragged) tail tile along the sublane axis.
    B3, H3, W3 = 1, 48, 48                      # S = 18, St = 8 -> 3 tiles, ragged
    y_pred3 = jax.random.normal(k1, (B3, C, H3, W3), dtype=jnp.float32)
    labels3 = jax.random.randint(k2, (B3, H3, W3), 0, C)
    y_true3 = jax.nn.one_hot(labels3, C, dtype=jnp.float32).transpose(0, 3, 1, 2)
    ref3 = _dice_loss_ref(y_pred3, y_true3)
    out3 = jax.block_until_ready(dice_loss(y_pred3, y_true3, _max_pix_tile=1024))
    assert jnp.allclose(out3, ref3, rtol=1e-3, atol=1e-3), (out3, ref3)

    print("KERNEL_OK")
</pallas_src>

<mosaic_0001>
module attributes {stable_mosaic.version = 11 : i64} {
  func.func @_dice_kernel(%arg0: i32, %arg1: i32, %arg2: memref<1x4x2x128xf32, #tpu.memory_space<vmem>>, %arg3: memref<1x4x2x128xf32, #tpu.memory_space<vmem>>, %arg4: memref<1x4x3xf32, #tpu.memory_space<vmem>>, %arg5: memref<4x3xf32, #tpu.memory_space<vmem>>) attributes {dimension_semantics = [#tpu.dimension_semantics<parallel>, #tpu.dimension_semantics<arbitrary>], iteration_bounds = array<i64: 2, 1>, scalar_prefetch = 0 : i64, scratch_operands = 1 : i64, tpu.core_type = #tpu.core_type<tc>, window_params = [{transform_indices = @transform_0, window_bounds = array<i64: 1, 4, 2, 128>}, {transform_indices = @transform_1, window_bounds = array<i64: 1, 4, 2, 128>}, {transform_indices = @transform_2, window_bounds = array<i64: 1, 4, 3>}]} {
    %c0_i32 = arith.constant 0 : i32
    %0 = arith.cmpi eq, %arg1, %c0_i32 : i32
    %1 = arith.extui %0 : i1 to i32
    %c0_i32_0 = arith.constant 0 : i32
    %2 = arith.cmpi ne, %1, %c0_i32_0 : i32
    scf.if %2 {
      %cst_21 = arith.constant 0.000000e+00 : f32
      %34 = vector.broadcast %cst_21 : f32 to vector<4x3xf32>
      %c0_22 = arith.constant 0 : index
      %c0_23 = arith.constant 0 : index
      %35 = vector.load %arg5[%c0_22, %c0_23] : memref<4x3xf32, #tpu.memory_space<vmem>>, vector<4x3xf32>
      tpu.vector_store %arg5[%c0_22, %c0_23], %34 {strides = array<i32>} : memref<4x3xf32, #tpu.memory_space<vmem>>, vector<4x3xf32>,
    } else {
    }
    %c0 = arith.constant 0 : index
    %c0_1 = arith.constant 0 : index
    %c0_2 = arith.constant 0 : index
    %c0_3 = arith.constant 0 : index
    %3 = vector.load %arg2[%c0, %c0_1, %c0_2, %c0_3] : memref<1x4x2x128xf32, #tpu.memory_space<vmem>>, vector<1x4x2x128xf32>
    %4 = vector.shape_cast %3 : vector<1x4x2x128xf32> to vector<4x2x128xf32>
    %cst = arith.constant dense<0xFF800000> : vector<2x128xf32>
    %5 = vector.multi_reduction <maximumf>, %4, %cst [0] : vector<4x2x128xf32> to vector<2x128xf32>
    %6 = vector.shape_cast %5 : vector<2x128xf32> to vector<1x2x128xf32>
    %7 = vector.broadcast %6 : vector<1x2x128xf32> to vector<4x2x128xf32>
    %8 = arith.subf %4, %7 : vector<4x2x128xf32>
    %9 = math.exp %8 : vector<4x2x128xf32>
    %cst_4 = arith.constant dense<0.000000e+00> : vector<2x128xf32>
    %10 = vector.multi_reduction <add>, %9, %cst_4 [0] : vector<4x2x128xf32> to vector<2x128xf32>
    %11 = vector.shape_cast %10 : vector<2x128xf32> to vector<1x2x128xf32>
    %12 = tpu.reciprocal %11 {approx = true} : vector<1x2x128xf32> -> vector<1x2x128xf32>
    %13 = vector.broadcast %12 : vector<1x2x128xf32> to vector<4x2x128xf32>
    %14 = arith.mulf %9, %13 : vector<4x2x128xf32>
    %c0_5 = arith.constant 0 : index
    %c0_6 = arith.constant 0 : index
    %c0_7 = arith.constant 0 : index
    %c0_8 = arith.constant 0 : index
    %15 = vector.load %arg3[%c0_5, %c0_6, %c0_7, %c0_8] : memref<1x4x2x128xf32, #tpu.memory_space<vmem>>, vector<1x4x2x128xf32>
    %16 = vector.shape_cast %15 : vector<1x4x2x128xf32> to vector<4x2x128xf32>
    %17 = arith.mulf %14, %16 : vector<4x2x128xf32>
    %cst_9 = arith.constant dense<0.000000e+00> : vector<4x128xf32>
    %18 = vector.multi_reduction <add>, %17, %cst_9 [1] : vector<4x2x128xf32> to vector<4x128xf32>
    %cst_10 = arith.constant dense<0.000000e+00> : vector<4xf32>
    %19 = vector.multi_reduction <add>, %18, %cst_10 [1] : vector<4x128xf32> to vector<4xf32>
    %20 = vector.shape_cast %19 : vector<4xf32> to vector<4x1xf32>
    %cst_11 = arith.constant dense<0.000000e+00> : vector<4x128xf32>
    %21 = vector.multi_reduction <add>, %14, %cst_11 [1] : vector<4x2x128xf32> to vector<4x128xf32>
    %cst_12 = arith.constant dense<0.000000e+00> : vector<4xf32>
    %22 = vector.multi_reduction <add>, %21, %cst_12 [1] : vector<4x128xf32> to vector<4xf32>
    %23 = vector.shape_cast %22 : vector<4xf32> to vector<4x1xf32>
    %cst_13 = arith.constant dense<0.000000e+00> : vector<4x128xf32>
    %24 = vector.multi_reduction <add>, %16, %cst_13 [1] : vector<4x2x128xf32> to vector<4x128xf32>
    %cst_14 = arith.constant dense<0.000000e+00> : vector<4xf32>
    %25 = vector.multi_reduction <add>, %24, %cst_14 [1] : vector<4x128xf32> to vector<4xf32>
    %26 = vector.shape_cast %25 : vector<4xf32> to vector<4x1xf32>
    %27 = tpu.concatenate %20, %23, %26 in 1 : vector<4x1xf32>, vector<4x1xf32>, vector<4x1xf32> -> vector<4x3xf32>
    %c0_15 = arith.constant 0 : index
    %c0_16 = arith.constant 0 : index
    %28 = vector.load %arg5[%c0_15, %c0_16] : memref<4x3xf32, #tpu.memory_space<vmem>>, vector<4x3xf32>
    %29 = arith.addf %28, %27 : vector<4x3xf32>
    %c0_17 = arith.constant 0 : index
    %c0_18 = arith.constant 0 : index
    %30 = vector.load %arg5[%c0_17, %c0_18] : memref<4x3xf32, #tpu.memory_space<vmem>>, vector<4x3xf32>
    tpu.vector_store %arg5[%c0_17, %c0_18], %29 {strides = array<i32>} : memref<4x3xf32, #tpu.memory_space<vmem>>, vector<4x3xf32>,
    %c0_i32_19 = arith.constant 0 : i32
    %31 = arith.cmpi eq, %arg1, %c0_i32_19 : i32
    %32 = arith.extui %31 : i1 to i32
    %c0_i32_20 = arith.constant 0 : i32
    %33 = arith.cmpi ne, %32, %c0_i32_20 : i32
    scf.if %33 {
      %c0_21 = arith.constant 0 : index
      %c0_22 = arith.constant 0 : index
      %34 = vector.load %arg5[%c0_21, %c0_22] : memref<4x3xf32, #tpu.memory_space<vmem>>, vector<4x3xf32>
      %c0_23 = arith.constant 0 : index
      %c0_24 = arith.constant 0 : index
      %c0_25 = arith.constant 0 : index
      %35 = vector.load %arg4[%c0_23, %c0_24, %c0_25] : memref<1x4x3xf32, #tpu.memory_space<vmem>>, vector<1x4x3xf32>
      %36 = vector.shape_cast %35 : vector<1x4x3xf32> to vector<4x3xf32>
      %37 = vector.shape_cast %34 : vector<4x3xf32> to vector<1x4x3xf32>
      tpu.vector_store %arg4[%c0_23, %c0_24, %c0_25], %37 {strides = array<i32>} : memref<1x4x3xf32, #tpu.memory_space<vmem>>, vector<1x4x3xf32>,
    } else {
    }
    return
  }
  func.func @transform_0(%arg0: i32, %arg1: i32) -> (i32, i32, i32, i32) {
    %c0_i32 = arith.constant 0 : i32
    %c0_i32_0 = arith.constant 0 : i32
    %c0_i32_1 = arith.constant 0 : i32
    return %arg0, %c0_i32, %arg1, %c0_i32_0 : i32, i32, i32, i32
  }
  func.func @transform_1(%arg0: i32, %arg1: i32) -> (i32, i32, i32, i32) {
    %c0_i32 = arith.constant 0 : i32
    %c0_i32_0 = arith.constant 0 : i32
    %c0_i32_1 = arith.constant 0 : i32
    return %arg0, %c0_i32, %arg1, %c0_i32_0 : i32, i32, i32, i32
  }
  func.func @transform_2(%arg0: i32, %arg1: i32) -> (i32, i32, i32) {
    %c0_i32 = arith.constant 0 : i32
    %c0_i32_0 = arith.constant 0 : i32
    %c0_i32_1 = arith.constant 0 : i32
    return %arg0, %c0_i32, %c0_i32_0 : i32, i32, i32
  }
}

</mosaic_0001>

<llo_original>
// kernel: tpu_custom_call.1
$region0: #{tpu_custom_call.1}
  #allocation0 [shape = 'u32[]', space=smem, size = 0x4, offset = 0x4, fixed_abs, tag = 'smem constant byte address 0x4 - core index']
  #allocation1 [shape = 'u32[144,128]{1,0:T(1,128)}', space=vmem, size = 0x12000, scoped, tag = 'internal scratch']
  #allocation2 [shape = 'f32[4,3]{1,0:T(4,128)}', space=vmem, size = 0x800, scoped, tag = 'scratch operand']
  %s0 = inlined_call_operand.hbm [shape: f32[2,4,2,128], index: 0, kind: input, shape index: {}]
  %s1 = inlined_call_operand.hbm [shape: f32[2,4,2,128], index: 1, kind: input, shape index: {}]
  %s2 = inlined_call_operand.hbm [shape: f32[2,4,3], index: 2, kind: output, shape index: {}]
  %s3 = sld [smem:[#allocation0]]
  $region57: #{tpu_custom_call.1} parent=0
    _
  %s5 = ssub.s32 1, %s3
  %s6 = scalar_select 0, %s5, %s3
  $region1: #{tpu_custom_call.1} parent=0
    #allocation3 [shape = 'u8[8192]{0}', space=vmem, size = 0x2000, scoped, tag = 'input window, operand 0']
    #allocation4 [shape = 's32[2]{0}', space=sflag, size = 0x8, scoped, tag = 'scoped memory for tpu_custom_call.1']
    #allocation5 [shape = 's32[2]{0}', space=sflag, size = 0x8, scoped, tag = 'scoped memory for tpu_custom_call.1']
    #allocation6 [shape = 'u8[8192]{0}', space=vmem, size = 0x2000, scoped, tag = 'input window, operand 1']
    #allocation7 [shape = 's32[2]{0}', space=sflag, size = 0x8, scoped, tag = 'scoped memory for tpu_custom_call.1']
    #allocation8 [shape = 'u8[4096]{0}', space=vmem, size = 0x1000, scoped, tag = 'output window, operand 0']
    %7 = vsyncpa [#allocation4], 0
    %s8 = scalar_lea.sflag [#allocation4], 1
    %9 = vsyncpa %s8, 0
    %10 = vsyncpa [#allocation7], 0
    %s11 = scalar_lea.sflag [#allocation7], 1
    %12 = vsyncpa %s11, 0
    %13 = vsyncpa [#allocation5], 0
    %s14 = scalar_lea.sflag [#allocation5], 1
    %15 = vsyncpa %s14, 0
    loop: start=0, step=1, limit=4
    $region2: #{tpu_custom_call.1} parent=1 // loop_pre_header
      _
    $region3: #{tpu_custom_call.1} parent=1 // loop_header
      %s17 = sphi 0, %s21
      %p18 = scmp.ge.s32.totalorder %s17, 4
      %s24 = sphi 0, %s36
      %s25 = sphi 0, %s32
      %s26 = sphi 0, %s24
      %s27 = sphi 0, %s25
      %s28 = sphi 0, %s26
      %s29 = sphi 0, %s27
      %s41 = sphi 0, %s43
      %s44 = sphi 0, %s41
      %s45 = sphi 0, %s44
      %s61 = sphi 0, %s45
      %s69 = sphi 0, %s71
      %s72 = sphi 0, %s69
      %s73 = sphi 0, %s72
      %s89 = sphi 0, %s73
      %s95 = sphi 0, %s97
      %s98 = sphi 0, %s95
      %s99 = sphi 0, %s98
      %s115 = sphi 0, %s99
    $region4: #{tpu_custom_call.1} parent=1 // loop_header_branch
      %20 = sbr.rel (%p18) target = $region8
    $region5: #{tpu_custom_call.1} parent=1 // loop_body
      %s22 = ssub.s32 %s17, 1
      %s23 = ssub.s32 %s17, 2
      %s30 = sadd.s32 1, %s25
      %p31 = scmp.ge.s32.totalorder %s30, 1
      %s32 = scalar_select %p31, 0, %s30
      %s33 = sadd.s32 1, %s24
      %s34 = scalar_select %p31, %s33, %s24
      %p35 = scmp.ge.s32.totalorder %s34, 2
      %s36 = scalar_select %p35, 0, %s34
      %s37 = ssub.s32 %s24, %s36
      %s38 = ssub.s32 %s25, %s32
      %s39 = sor.u32 %s37, %s38
      %p40 = scmp.eq.s32.totalorder %s39, 0
      %s42 = sadd.s32 %s41, 1
      %s43 = scalar_select %p40, %s41, %s42
      %p46 = pneg %p40
      %p47 = scmp.eq.s32.totalorder %s17, 1
      %p48 = por %p46, %p47
      %p49 = scmp.ne.s32.totalorder %s41, %s44
      %p50 = scmp.eq.s32.totalorder %s17, 0
      %p51 = por %p49, %p50
      %p52 = scmp.ne.s32.totalorder %s41, %s44
      %p53 = scmp.eq.s32.totalorder %s22, 1
      %p54 = por %p52, %p53
      %p55 = scmp.ne.s32.totalorder %s44, %s45
      %p56 = scmp.eq.s32.totalorder %s22, 0
      %p57 = por %p55, %p56
      %p58 = scmp.ne.s32.totalorder %s44, %s45
      %p59 = scmp.eq.s32.totalorder %s23, 1
      %p60 = por %p58, %p59
      %p62 = scmp.ne.s32.totalorder %s45, %s61
      %p63 = scmp.eq.s32.totalorder %s23, 0
      %p64 = por %p62, %p63
      %s65 = ssub.s32 %s24, %s36
      %s66 = ssub.s32 %s25, %s32
      %s67 = sor.u32 %s65, %s66
      %p68 = scmp.eq.s32.totalorder %s67, 0
      %s70 = sadd.s32 %s69, 1
      %s71 = scalar_select %p68, %s69, %s70
      %p74 = pneg %p68
      %p75 = scmp.eq.s32.totalorder %s17, 1
      %p76 = por %p74, %p75
      %p77 = scmp.ne.s32.totalorder %s69, %s72
      %p78 = scmp.eq.s32.totalorder %s17, 0
      %p79 = por %p77, %p78
      %p80 = scmp.ne.s32.totalorder %s69, %s72
      %p81 = scmp.eq.s32.totalorder %s22, 1
      %p82 = por %p80, %p81
      %p83 = scmp.ne.s32.totalorder %s72, %s73
      %p84 = scmp.eq.s32.totalorder %s22, 0
      %p85 = por %p83, %p84
      %p86 = scmp.ne.s32.totalorder %s72, %s73
      %p87 = scmp.eq.s32.totalorder %s23, 1
      %p88 = por %p86, %p87
      %p90 = scmp.ne.s32.totalorder %s73, %s89
      %p91 = scmp.eq.s32.totalorder %s23, 0
      %p92 = por %p90, %p91
      %s93 = ssub.s32 %s24, %s36
      %p94 = scmp.eq.s32.totalorder %s93, 0
      %s96 = sadd.s32 %s95, 1
      %s97 = scalar_select %p94, %s95, %s96
      %p100 = pneg %p94
      %p101 = scmp.eq.s32.totalorder %s17, 1
      %p102 = por %p100, %p101
      %p103 = scmp.ne.s32.totalorder %s95, %s98
      %p104 = scmp.eq.s32.totalorder %s17, 0
      %p105 = por %p103, %p104
      %p106 = scmp.ne.s32.totalorder %s95, %s98
      %p107 = scmp.eq.s32.totalorder %s22, 1
      %p108 = por %p106, %p107
      %p109 = scmp.ne.s32.totalorder %s98, %s99
      %p110 = scmp.eq.s32.totalorder %s22, 0
      %p111 = por %p109, %p110
      %p112 = scmp.ne.s32.totalorder %s98, %s99
      %p113 = scmp.eq.s32.totalorder %s23, 1
      %p114 = por %p112, %p113
      %p116 = scmp.ne.s32.totalorder %s99, %s115
      %p117 = scmp.eq.s32.totalorder %s23, 0
      %p118 = por %p116, %p117
      %p119 = scmp.le.s32.totalorder 1, %s17
      %p120 = scmp.lt.s32.totalorder %s17, 3
      %p121 = pnand %p119, %p120
      %p122 = pneg %p121
      // Predicated region
      $region9: #{tpu_custom_call.1} parent=5 // pred_check
        _
      $region10: #{tpu_custom_call.1} parent=5 // pred_check_branch
        %124 = sbr.rel (%p121) target = $region12
      $region11: #{tpu_custom_call.1} parent=5 // pred_region
        %s125 = ssub.s32 %s17, 1
      $region12: #{tpu_custom_call.1} parent=5 // pred_fallthru
        _
      %p126 = scmp.lt.s32.totalorder %s17, 2
      // Predicated region
      $region13: #{tpu_custom_call.1} parent=5 // pred_check
        %p127 = pneg %p126
      $region14: #{tpu_custom_call.1} parent=5 // pred_check_branch
        %129 = sbr.rel (%p127) target = $region16
      $region15: #{tpu_custom_call.1} parent=5 // pred_region
        // Predicated region
        $region17: #{tpu_custom_call.1} parent=15 // pred_check
          %p130 = pneg %p51
        $region18: #{tpu_custom_call.1} parent=15 // pred_check_branch
          %132 = sbr.rel (%p130) target = $region20
        $region19: #{tpu_custom_call.1} parent=15 // pred_region
          %s133 = sand.u32 %s41, 1
          %s134 = scalar_lea.sflag [#allocation4], %s133
          %s135 = sand.u32 %s41, 1
          %s136 = smul.addr %s135, 8
          %s137 = scalar_lea.vmem [#allocation3], %s136
          %s139 = ssub.s32 128, 128
          %140 = vsyncadd %s134, %s139
          %s141 = smul.addr %s24, 4
          %s142 = sadd.s32 %s25, %s141
          %s143 = smul.addr %s142, 32
          %s144 = scalar_lea.hbm %s0, %s143
          %s145 = sshll.u32 %s137, 4
          %s146 = int_to_ptr.vmem [resolvable:$true] %s145
          %151 = dma.hbm_to_vmem [thread:$0]  %s144, 128, %s146, %s134, 32, 32, 2
        $region20: #{tpu_custom_call.1} parent=15 // pred_fallthru
          _
        // Predicated region
        $region21: #{tpu_custom_call.1} parent=15 // pred_check
          %p152 = pneg %p79
        $region22: #{tpu_custom_call.1} parent=15 // pred_check_branch
          %154 = sbr.rel (%p152) target = $region24
        $region23: #{tpu_custom_call.1} parent=15 // pred_region
          %s155 = sand.u32 %s69, 1
          %s156 = scalar_lea.sflag [#allocation7], %s155
          %s157 = sand.u32 %s69, 1
          %s158 = smul.addr %s157, 8
          %s159 = scalar_lea.vmem [#allocation6], %s158
          %s161 = ssub.s32 128, 128
          %162 = vsyncadd %s156, %s161
          %s163 = smul.addr %s24, 4
          %s164 = sadd.s32 %s25, %s163
          %s165 = smul.addr %s164, 32
          %s166 = scalar_lea.hbm %s1, %s165
          %s167 = sshll.u32 %s159, 4
          %s168 = int_to_ptr.vmem [resolvable:$true] %s167
          %173 = dma.hbm_to_vmem [thread:$0]  %s166, 128, %s168, %s156, 32, 32, 2
        $region24: #{tpu_custom_call.1} parent=15 // pred_fallthru
          _
      $region16: #{tpu_custom_call.1} parent=5 // pred_fallthru
        _
      %p174 = scmp.le.s32.totalorder 1, %s17
      %p175 = scmp.lt.s32.totalorder %s17, 3
      %p176 = pnand %p174, %p175
      %p177 = pneg %p176
      // Predicated region
      $region25: #{tpu_custom_call.1} parent=5 // pred_check
        _
      $region26: #{tpu_custom_call.1} parent=5 // pred_check_branch
        %179 = sbr.rel (%p176) target = $region28
      $region27: #{tpu_custom_call.1} parent=5 // pred_region
        %s180 = ssub.s32 %s17, 1
        %s181 = sand.u32 %s44, 1
        %s182 = scalar_lea.sflag [#allocation4], %s181
        %s183 = sand.u32 %s44, 1
        %s184 = smul.addr %s183, 8
        %s185 = scalar_lea.vmem [#allocation3], %s184
        // Predicated region
        $region29: #{tpu_custom_call.1} parent=27 // pred_check
          %p186 = pneg %p57
        $region30: #{tpu_custom_call.1} parent=27 // pred_check_branch
          %188 = sbr.rel (%p186) target = $region32
        $region31: #{tpu_custom_call.1} parent=27 // pred_region
          %189 = dma.done %s182, 128
        $region32: #{tpu_custom_call.1} parent=27 // pred_fallthru
          _
        %s190 = sand.u32 %s72, 1
        %s191 = scalar_lea.sflag [#allocation7], %s190
        %s192 = sand.u32 %s72, 1
        %s193 = smul.addr %s192, 8
        %s194 = scalar_lea.vmem [#allocation6], %s193
        // Predicated region
        $region33: #{tpu_custom_call.1} parent=27 // pred_check
          %p195 = pneg %p85
        $region34: #{tpu_custom_call.1} parent=27 // pred_check_branch
          %197 = sbr.rel (%p195) target = $region36
        $region35: #{tpu_custom_call.1} parent=27 // pred_region
          %198 = dma.done %s191, 128
        $region36: #{tpu_custom_call.1} parent=27 // pred_fallthru
          _
        %s199 = sand.u32 %s44, 1
        %s200 = scalar_lea.sflag [#allocation4], %s199
        %s201 = sand.u32 %s44, 1
        %s202 = smul.addr %s201, 8
        %s203 = scalar_lea.vmem [#allocation3], %s202
        %p204 = pneg %p57
        %p205 = pneg %p54
        %s206 = sand.u32 %s72, 1
        %s207 = scalar_lea.sflag [#allocation7], %s206
        %s208 = sand.u32 %s72, 1
        %s209 = smul.addr %s208, 8
        %s210 = scalar_lea.vmem [#allocation6], %s209
        %p211 = pneg %p85
        %p212 = pneg %p82
        %p213 = pneg %p111
        %p214 = pneg %p108
        %s215 = sand.u32 %s98, 1
        %s216 = scalar_lea.sflag [#allocation5], %s215
        %s217 = sand.u32 %s98, 1
        %s218 = smul.addr %s217, 4
        %s219 = scalar_lea.vmem [#allocation8], %s218
        %p220 = scmp.eq.s32.totalorder %s27, 0
        // Predicated region
        $region37: #{tpu_custom_call.1} parent=27 // pred_check
          %p221 = pneg %p220
        $region38: #{tpu_custom_call.1} parent=27 // pred_check_branch
          %223 = sbr.rel (%p221) target = $region40
        $region39: #{tpu_custom_call.1} parent=27 // pred_region
          %vm224 = vcmask 19456
          %225 = vst.msk [vmem:[#allocation2] sm:$0xf] %vm224, 0.0
        $region40: #{tpu_custom_call.1} parent=27 // pred_fallthru
          _
        %v226 = vld [vmem:[%s185] sm:$0x3]
        %v227 = vld [vmem:[%s185 + $0x2] sm:$0x3]
        %v228 = vld [vmem:[%s185 + $0x4] sm:$0x3]
        %v229 = vld [vmem:[%s185 + $0x6] sm:$0x3]
        %vm230 = vcmask 1041408
        %v231 = vsel %vm230, %v226, -inf
        %v232 = vsel %vm230, %v227, -inf
        %v233 = vsel %vm230, %v228, -inf
        %v234 = vsel %vm230, %v229, -inf
        %v235 = vmax.f32 %v231, %v232
        %v236 = vmax.f32 %v233, %v234
        %v237 = vmax.f32 %v235, %v236
        %v238 = vsub.f32 %v226, %v237
        %v239 = vsub.f32 %v227, %v237
        %v240 = vsub.f32 %v228, %v237
        %v241 = vsub.f32 %v229, %v237
        %v242 = vmul.f32 %v238, 1.442695
        %v243 = vpow.pop %v242
        %v244 = vmul.f32 %v239, 1.442695
        %v245 = vpow.pop %v244
        %v246 = vmul.f32 %v240, 1.442695
        %v247 = vpow.pop %v246
        %v248 = vmul.f32 %v241, 1.442695
        %v249 = vpow.pop %v248
        %v250 = vsel %vm230, %v243, 0.0
        %v251 = vsel %vm230, %v245, 0.0
        %v252 = vadd.f32 %v250, %v251
        %v253 = vsel %vm230, %v247, 0.0
        %v254 = vadd.f32 %v252, %v253
        %v255 = vsel %vm230, %v249, 0.0
        %v256 = vadd.f32 %v254, %v255
        %v257 = vrcp.pop %v256
        %v258 = vmul.f32 %v243, %v257
        %v259 = vmul.f32 %v245, %v257
        %v260 = vmul.f32 %v247, %v257
        %v261 = vmul.f32 %v249, %v257
        %v262 = vld [vmem:[%s194] sm:$0x3]
        %v263 = vld [vmem:[%s194 + $0x2] sm:$0x3]
        %v264 = vld [vmem:[%s194 + $0x4] sm:$0x3]
        %v265 = vld [vmem:[%s194 + $0x6] sm:$0x3]
        %v266 = vmul.f32 %v258, %v262
        %v267 = vmul.f32 %v259, %v263
        %v268 = vmul.f32 %v260, %v264
        %v269 = vmul.f32 %v261, %v265
        %v270 = vsel %vm230, %v266, 0.0
        %v271 = vrot.slane %v270, 4
        %v272 = vadd.f32 %v270, %v271
        %v273 = vrot.slane %v272, 2
        %v274 = vadd.f32 %v272, %v273
        %v275 = vrot.slane %v274, 1
        %v276 = vadd.f32 %v274, %v275
        %v277 = vsel %vm230, %v267, 0.0
        %v278 = vrot.slane %v277, 4
        %v279 = vadd.f32 %v277, %v278
        %v280 = vrot.slane %v279, 2
        %v281 = vadd.f32 %v279, %v280
        %v282 = vrot.slane %v281, 1
        %v283 = vadd.f32 %v281, %v282
        %v284 = vsel %vm230, %v268, 0.0
        %v285 = vrot.slane %v284, 4
        %v286 = vadd.f32 %v284, %v285
        %v287 = vrot.slane %v286, 2
        %v288 = vadd.f32 %v286, %v287
        %v289 = vrot.slane %v288, 1
        %v290 = vadd.f32 %v288, %v289
        %v291 = vsel %vm230, %v269, 0.0
        %v292 = vrot.slane %v291, 4
        %v293 = vadd.f32 %v291, %v292
        %v294 = vrot.slane %v293, 2
        %v295 = vadd.f32 %v293, %v294
        %v296 = vrot.slane %v295, 1
        %v297 = vadd.f32 %v295, %v296
        %vm302 = vcmask 1041409
        %v303 = vsel %vm302, %v283, %v276
        %vm304 = vcmask 1042434
        %v305 = vsel %vm304, %v290, %v303
        %vm306 = vcmask 1043459
        %v307 = vsel %vm306, %v297, %v305
        %vm309 = vcmask 1043456
        %v310 = vsel %vm309, %v307, 0.0
        %311 = vadd.xlane.f32.xlu0 %v310
        %v312 = vpop.xlane.xlu0 %311
        %v313 = vsel %vm230, %v258, 0.0
        %v314 = vrot.slane %v313, 4
        %v315 = vadd.f32 %v313, %v314
        %v316 = vrot.slane %v315, 2
        %v317 = vadd.f32 %v315, %v316
        %v318 = vrot.slane %v317, 1
        %v319 = vadd.f32 %v317, %v318
        %v320 = vsel %vm230, %v259, 0.0
        %v321 = vrot.slane %v320, 4
        %v322 = vadd.f32 %v320, %v321
        %v323 = vrot.slane %v322, 2
        %v324 = vadd.f32 %v322, %v323
        %v325 = vrot.slane %v324, 1
        %v326 = vadd.f32 %v324, %v325
        %v327 = vsel %vm230, %v260, 0.0
        %v328 = vrot.slane %v327, 4
        %v329 = vadd.f32 %v327, %v328
        %v330 = vrot.slane %v329, 2
        %v331 = vadd.f32 %v329, %v330
        %v332 = vrot.slane %v331, 1
        %v333 = vadd.f32 %v331, %v332
        %v334 = vsel %vm230, %v261, 0.0
        %v335 = vrot.slane %v334, 4
        %v336 = vadd.f32 %v334, %v335
        %v337 = vrot.slane %v336, 2
        %v338 = vadd.f32 %v336, %v337
        %v339 = vrot.slane %v338, 1
        %v340 = vadd.f32 %v338, %v339
        %v345 = vsel %vm302, %v326, %v319
        %v346 = vsel %vm304, %v333, %v345
        %v347 = vsel %vm306, %v340, %v346
        %v349 = vsel %vm309, %v347, 0.0
        %350 = vadd.xlane.f32.xlu0 %v349
        %v351 = vpop.xlane.xlu0 %350
        %v352 = vsel %vm230, %v262, 0.0
        %v353 = vrot.slane %v352, 4
        %v354 = vadd.f32 %v352, %v353
        %v355 = vrot.slane %v354, 2
        %v356 = vadd.f32 %v354, %v355
        %v357 = vrot.slane %v356, 1
        %v358 = vadd.f32 %v356, %v357
        %v359 = vsel %vm230, %v263, 0.0
        %v360 = vrot.slane %v359, 4
        %v361 = vadd.f32 %v359, %v360
        %v362 = vrot.slane %v361, 2
        %v363 = vadd.f32 %v361, %v362
        %v364 = vrot.slane %v363, 1
        %v365 = vadd.f32 %v363, %v364
        %v366 = vsel %vm230, %v264, 0.0
        %v367 = vrot.slane %v366, 4
        %v368 = vadd.f32 %v366, %v367
        %v369 = vrot.slane %v368, 2
        %v370 = vadd.f32 %v368, %v369
        %v371 = vrot.slane %v370, 1
        %v372 = vadd.f32 %v370, %v371
        %v373 = vsel %vm230, %v265, 0.0
        %v374 = vrot.slane %v373, 4
        %v375 = vadd.f32 %v373, %v374
        %v376 = vrot.slane %v375, 2
        %v377 = vadd.f32 %v375, %v376
        %v378 = vrot.slane %v377, 1
        %v379 = vadd.f32 %v377, %v378
        %v384 = vsel %vm302, %v365, %v358
        %v385 = vsel %vm304, %v372, %v384
        %v386 = vsel %vm306, %v379, %v385
        %v388 = vsel %vm309, %v386, 0.0
        %389 = vadd.xlane.f32.xlu0 %v388
        %v390 = vpop.xlane.xlu0 %389
        %vm391 = vcmask 7168
        %v392 = vsel %vm391, %v312, %v351
        %vm393 = vcmask 15360
        %v394 = vsel %vm393, %v392, %v390
        %v395 = vld [vmem:[#allocation2] sm:$0xf]
        %v396 = vadd.f32 %v395, %v394
        %vm397 = vcmask 19456
        %398 = vst.msk [vmem:[#allocation2] sm:$0xf] %vm397, %v396
        // Predicated region
        $region41: #{tpu_custom_call.1} parent=27 // pred_check
          %p399 = pneg %p220
        $region42: #{tpu_custom_call.1} parent=27 // pred_check_branch
          %401 = sbr.rel (%p399) target = $region44
        $region43: #{tpu_custom_call.1} parent=27 // pred_region
          %v402 = vld [vmem:[#allocation2] sm:$0xf]
          %403 = vst.msk [vmem:[%s219] sm:$0xf] %vm397, %v402
        $region44: #{tpu_custom_call.1} parent=27 // pred_fallthru
          _
        %s404 = sand.u32 %s98, 1
        %s405 = scalar_lea.sflag [#allocation5], %s404
        %s406 = sand.u32 %s98, 1
        %s407 = smul.addr %s406, 4
        %s408 = scalar_lea.vmem [#allocation8], %s407
        // Predicated region
        $region45: #{tpu_custom_call.1} parent=27 // pred_check
          %p409 = pneg %p108
        $region46: #{tpu_custom_call.1} parent=27 // pred_check_branch
          %411 = sbr.rel (%p409) target = $region48
        $region47: #{tpu_custom_call.1} parent=27 // pred_region
          %s413 = ssub.s32 64, 64
          %414 = vsyncadd %s405, %s413
          %s415 = smul.addr %s26, 64
          %s416 = scalar_lea.hbm %s2, %s415
          %s418 = sshll.u32 %s408, 4
          %s419 = int_to_ptr.vmem [resolvable:$true] %s418
          %421 = dma.vmem_to_hbm [thread:$0]  %s419, 64, %s416, %s405
        $region48: #{tpu_custom_call.1} parent=27 // pred_fallthru
          _
      $region28: #{tpu_custom_call.1} parent=5 // pred_fallthru
        _
      %p422 = scmp.le.s32.totalorder 2, %s17
      // Predicated region
      $region49: #{tpu_custom_call.1} parent=5 // pred_check
        %p423 = pneg %p422
      $region50: #{tpu_custom_call.1} parent=5 // pred_check_branch
        %425 = sbr.rel (%p423) target = $region52
      $region51: #{tpu_custom_call.1} parent=5 // pred_region
        %s426 = ssub.s32 %s17, 2
        // Predicated region
        $region53: #{tpu_custom_call.1} parent=51 // pred_check
          %p427 = pneg %p114
        $region54: #{tpu_custom_call.1} parent=51 // pred_check_branch
          %429 = sbr.rel (%p427) target = $region56
        $region55: #{tpu_custom_call.1} parent=51 // pred_region
          %s430 = sand.u32 %s99, 1
          %s431 = scalar_lea.sflag [#allocation5], %s430
          %s432 = sand.u32 %s99, 1
          %s433 = smul.addr %s432, 4
          %s434 = scalar_lea.vmem [#allocation8], %s433
          %435 = dma.done %s431, 64
        $region56: #{tpu_custom_call.1} parent=51 // pred_fallthru
          _
      $region52: #{tpu_custom_call.1} parent=5 // pred_fallthru
        _
    $region6: #{tpu_custom_call.1} parent=1 // loop_footer
      %s21 = sadd.s32 1, %s17
    $region7: #{tpu_custom_call.1} parent=1 // loop_footer_branch
      %16 = sbr.rel target = $region3
    $region8: #{tpu_custom_call.1} parent=1 // loop_exit
      _
    %436 = vsyncpa [#allocation4], 1
    %s437 = scalar_lea.sflag [#allocation4], 1
    %438 = vsyncpa %s437, 1
    %439 = vsyncpa [#allocation7], 1
    %s440 = scalar_lea.sflag [#allocation7], 1
    %441 = vsyncpa %s440, 1
    %442 = vsyncpa [#allocation5], 1
    %s443 = scalar_lea.sflag [#allocation5], 1
    %444 = vsyncpa %s443, 1

</llo_original>
